<compile_context>
chip_gen: v5e
topology: v5e:2x2
jax: 0.10.0
libtpu: 0.0.40
codegen_flags: <defaults>
</compile_context>

<pallas_src>
import jax
import jax.numpy as jnp
import numpy as np
from jax.experimental import pallas as pl
from jax.experimental.pallas import tpu as pltpu


# ----------------------------------------------------------------------------
# Pallas kernel: LSTM recurrence (input projection pre-folded) + dense head + ReLU
# ----------------------------------------------------------------------------
def digitsum_lstm_kernel(gx_ref,     # (S, B, 4H) f32   precomputed x-side gates (emb@W_ih^T + b)
                         mask_ref,   # (S, B, H)  f32   {0,1} state-update masks (t < length)
                         h0_ref,     # (B, H)     f32   initial hidden state
                         c0_ref,     # (B, H)     f32   initial cell state
                         whh_ref,    # (H, 4H)    bf16  hidden->gates weight (transposed)
                         wd_ref,     # (1, H)     f32   dense weight row
                         bd_ref,     # (1, 1)     f32   dense bias
                         out_ref):   # (B, 1)     f32   relu(dense(hn))
    seq_len = gx_ref.shape[0]
    hidden = h0_ref.shape[1]

    whh = whh_ref[...]                               # (H, 4H) bf16, loaded once

    def step(t, carry):
        h, c = carry
        # Recurrent projection only: x-side gates were precomputed in the wrapper.
        gates = gx_ref[t] + jnp.dot(h.astype(jnp.bfloat16), whh,
                                    preferred_element_type=jnp.float32)     # (B, 4H) f32
        # Full-width activations (one vreg each), then static lane slices per gate.
        sig = jax.nn.sigmoid(gates)
        tnh = jnp.tanh(gates)
        # PyTorch LSTM gate order along 4H: input, forget, cell(g), output.
        i_g = sig[:, 0 * hidden:1 * hidden]
        f_g = sig[:, 1 * hidden:2 * hidden]
        g_g = tnh[:, 2 * hidden:3 * hidden]
        o_g = sig[:, 3 * hidden:4 * hidden]
        c_new = f_g * c + i_g * g_g
        h_new = o_g * jnp.tanh(c_new)
        # Packed-sequence semantics: freeze (h, c) once t >= lengths[b].
        m = mask_ref[t]                              # (B, H) f32 in {0, 1}
        c = c + m * (c_new - c)
        h = h + m * (h_new - h)
        return (h, c)

    h_final, _ = jax.lax.fori_loop(0, seq_len, step,
                                   (h0_ref[...], c0_ref[...]), unroll=True)

    # Dense head (H -> 1) as VPU multiply + lane reduction, then ReLU.
    logits = jnp.sum(h_final * wd_ref[...], axis=-1, keepdims=True) + bd_ref[...]
    out_ref[...] = jnp.maximum(logits, 0.0)


# ----------------------------------------------------------------------------
# Wrapper
# ----------------------------------------------------------------------------
def digitsum_lstm_forward(inputs, lengths, params, h0, c0):
    """inputs: (B, S) int32 digit ids in [0, 11); lengths: (B,) int32."""
    B, S = inputs.shape
    H = params["embed"].shape[1]

    # Fold the input projection into the embedding: pre-gated table (11, 4H),
    # then gather by token id -> gates_x in time-major, lane-dense (S, B, 4H).
    bias = params["b_ih"] + params["b_hh"]                              # (4H,)
    pregate = (params["embed"] @ params["w_ih"].T + bias).astype(jnp.float32)  # (11, 4H)
    gx = jnp.take(pregate, inputs, axis=0)                              # (B, S, 4H)
    gx = jnp.transpose(gx, (1, 0, 2)).astype(jnp.float32)               # (S, B, 4H)

    # Precompute per-step {0,1} state-update masks (t < lengths[b]), broadcast to H lanes.
    t_idx = jnp.arange(S, dtype=jnp.int32)[:, None]                     # (S, 1)
    step_mask = (t_idx < lengths.astype(jnp.int32)[None, :])            # (S, B)
    step_mask = jnp.broadcast_to(step_mask[:, :, None], (S, B, H)).astype(jnp.float32)

    whh_bf16 = params["w_hh"].T.astype(jnp.bfloat16)                    # (H, 4H)
    wd_row = params["dense_w"].reshape(1, H).astype(jnp.float32)        # (1, H)
    bd = params["dense_b"].reshape(1, 1).astype(jnp.float32)            # (1, 1)

    vmem_spec = pl.BlockSpec(memory_space=pltpu.MemorySpace.VMEM)

    return pl.pallas_call(
        digitsum_lstm_kernel,
        out_shape=jax.ShapeDtypeStruct((B, 1), jnp.float32),
        in_specs=[vmem_spec] * 7,
        out_specs=vmem_spec,
    )(gx, step_mask, h0.astype(jnp.float32), c0.astype(jnp.float32),
      whh_bf16, wd_row, bd)


# ----------------------------------------------------------------------------
# Pure-JAX f32 reference (for correctness check)
# ----------------------------------------------------------------------------
def reference_forward(inputs, lengths, params, h0, c0):
    B, S = inputs.shape
    H = params["embed"].shape[1]
    x_emb = jnp.take(params["embed"], inputs, axis=0)                   # (B, S, H)
    h, c = h0, c0
    bias = params["b_ih"] + params["b_hh"]
    for t in range(S):
        x_t = x_emb[:, t, :]
        gates = x_t @ params["w_ih"].T + h @ params["w_hh"].T + bias
        i_g = jax.nn.sigmoid(gates[:, 0 * H:1 * H])
        f_g = jax.nn.sigmoid(gates[:, 1 * H:2 * H])
        g_g = jnp.tanh(gates[:, 2 * H:3 * H])
        o_g = jax.nn.sigmoid(gates[:, 3 * H:4 * H])
        c_new = f_g * c + i_g * g_g
        h_new = o_g * jnp.tanh(c_new)
        mask = (t < lengths)[:, None]
        h = jnp.where(mask, h_new, h)
        c = jnp.where(mask, c_new, c)
    logits = h @ params["dense_w"].T + params["dense_b"]
    return jnp.maximum(logits, 0.0)


# ----------------------------------------------------------------------------
# Deterministic parameter init (shapes per DigitsumLstm.__init__)
# ----------------------------------------------------------------------------
def init_params(key, hidden_size):
    ks = jax.random.split(key, 7)
    bound = 1.0 / np.sqrt(hidden_size)
    return {
        "embed": jax.random.normal(ks[0], (11, hidden_size), jnp.float32),
        "w_ih": jax.random.uniform(ks[1], (4 * hidden_size, hidden_size),
                                   jnp.float32, -bound, bound),
        "w_hh": jax.random.uniform(ks[2], (4 * hidden_size, hidden_size),
                                   jnp.float32, -bound, bound),
        "b_ih": jax.random.uniform(ks[3], (4 * hidden_size,), jnp.float32, -bound, bound),
        "b_hh": jax.random.uniform(ks[4], (4 * hidden_size,), jnp.float32, -bound, bound),
        "dense_w": jax.random.uniform(ks[5], (1, hidden_size), jnp.float32, -bound, bound),
        "dense_b": jax.random.uniform(ks[6], (1,), jnp.float32, -bound, bound),
    }
    # TODO(synk): nn.LSTM(dropout=0.25) with num_layers=1 is a no-op in forward; omitted.


if __name__ == "__main__":
    BATCH, SEQ, HIDDEN = 8, 8, 32

    key = jax.random.PRNGKey(0)
    k_params, k_inp, k_len, k_h0, k_c0 = jax.random.split(key, 5)

    params = init_params(k_params, HIDDEN)

    inputs = jax.random.randint(k_inp, (BATCH, SEQ), 0, 11, dtype=jnp.int32)
    lengths = jax.random.randint(k_len, (BATCH,), 1, SEQ + 1, dtype=jnp.int32)
    # h0/c0 are torch.randn in the module; generated deterministically here.
    h0 = jax.random.normal(k_h0, (BATCH, HIDDEN), jnp.float32)
    c0 = jax.random.normal(k_c0, (BATCH, HIDDEN), jnp.float32)

    out = digitsum_lstm_forward(inputs, lengths, params, h0, c0)
    out = jax.block_until_ready(out)

    ref = reference_forward(inputs, lengths, params, h0, c0)
    assert out.shape == (BATCH, 1)
    # Tolerance relaxed vs. the pure-f32 version because the recurrent matmul uses
    # bf16 operands (f32 accumulation); observed error is ~1e-3..1e-2 at these shapes.
    np.testing.assert_allclose(np.asarray(out), np.asarray(ref), rtol=5e-2, atol=5e-2)

    print("KERNEL_OK")
</pallas_src>

<mosaic_0001>
module attributes {stable_mosaic.version = 11 : i64} {
  func.func @digitsum_lstm_kernel(%arg0: memref<8x8x128xf32, #tpu.memory_space<vmem>>, %arg1: memref<8x8x32xf32, #tpu.memory_space<vmem>>, %arg2: memref<8x32xf32, #tpu.memory_space<vmem>>, %arg3: memref<8x32xf32, #tpu.memory_space<vmem>>, %arg4: memref<32x128xbf16, #tpu.memory_space<vmem>>, %arg5: memref<1x32xf32, #tpu.memory_space<vmem>>, %arg6: memref<1x1xf32, #tpu.memory_space<vmem>>, %arg7: memref<8x1xf32, #tpu.memory_space<vmem>>) attributes {dimension_semantics = [], scalar_prefetch = 0 : i64, scratch_operands = 0 : i64, tpu.core_type = #tpu.core_type<tc>} {
    %c0 = arith.constant 0 : index
    %c0_0 = arith.constant 0 : index
    %0 = vector.load %arg4[%c0, %c0_0] : memref<32x128xbf16, #tpu.memory_space<vmem>>, vector<32x128xbf16>
    %c0_1 = arith.constant 0 : index
    %c0_2 = arith.constant 0 : index
    %1 = vector.load %arg2[%c0_1, %c0_2] : memref<8x32xf32, #tpu.memory_space<vmem>>, vector<8x32xf32>
    %c0_3 = arith.constant 0 : index
    %c0_4 = arith.constant 0 : index
    %2 = vector.load %arg3[%c0_3, %c0_4] : memref<8x32xf32, #tpu.memory_space<vmem>>, vector<8x32xf32>
    %c0_i32 = arith.constant 0 : i32
    %3 = arith.index_cast %c0_i32 : i32 to index
    %c0_5 = arith.constant 0 : index
    %c0_6 = arith.constant 0 : index
    %4 = vector.load %arg0[%3, %c0_5, %c0_6] : memref<8x8x128xf32, #tpu.memory_space<vmem>>, vector<1x8x128xf32>
    %5 = vector.shape_cast %4 : vector<1x8x128xf32> to vector<8x128xf32>
    %6 = arith.truncf %1 : vector<8x32xf32> to vector<8x32xbf16>
    %cst = arith.constant dense<0.000000e+00> : vector<8x128xf32>
    %7 = tpu.matmul %6, %0, %cst {dimension_numbers = #tpu.dot_dimension_numbers<[1], [0], [0], [1], [0, 0, 1, 1], [], []>} : vector<8x32xbf16>, vector<32x128xbf16>, vector<8x128xf32> -> vector<8x128xf32>
    %8 = arith.addf %5, %7 : vector<8x128xf32>
    %9 = arith.negf %8 : vector<8x128xf32>
    %10 = math.exp %9 : vector<8x128xf32>
    %cst_7 = arith.constant 1.000000e+00 : f32
    %11 = vector.broadcast %cst_7 : f32 to vector<8x128xf32>
    %12 = arith.addf %11, %10 : vector<8x128xf32>
    %13 = arith.divf %11, %12 : vector<8x128xf32>
    %14 = math.tanh %8 : vector<8x128xf32>
    %15 = vector.extract_strided_slice %13 {offsets = [0, 0], sizes = [8, 32], strides = [1, 1]} : vector<8x128xf32> to vector<8x32xf32>
    %16 = vector.extract_strided_slice %13 {offsets = [0, 32], sizes = [8, 32], strides = [1, 1]} : vector<8x128xf32> to vector<8x32xf32>
    %17 = vector.extract_strided_slice %14 {offsets = [0, 64], sizes = [8, 32], strides = [1, 1]} : vector<8x128xf32> to vector<8x32xf32>
    %18 = vector.extract_strided_slice %13 {offsets = [0, 96], sizes = [8, 32], strides = [1, 1]} : vector<8x128xf32> to vector<8x32xf32>
    %19 = arith.mulf %16, %2 : vector<8x32xf32>
    %20 = arith.mulf %15, %17 : vector<8x32xf32>
    %21 = arith.addf %19, %20 : vector<8x32xf32>
    %22 = math.tanh %21 : vector<8x32xf32>
    %23 = arith.mulf %18, %22 : vector<8x32xf32>
    %24 = arith.index_cast %c0_i32 : i32 to index
    %c0_8 = arith.constant 0 : index
    %c0_9 = arith.constant 0 : index
    %25 = vector.load %arg1[%24, %c0_8, %c0_9] : memref<8x8x32xf32, #tpu.memory_space<vmem>>, vector<1x8x32xf32>
    %26 = vector.shape_cast %25 : vector<1x8x32xf32> to vector<8x32xf32>
    %27 = arith.subf %21, %2 : vector<8x32xf32>
    %28 = arith.mulf %26, %27 : vector<8x32xf32>
    %29 = arith.addf %2, %28 : vector<8x32xf32>
    %30 = arith.subf %23, %1 : vector<8x32xf32>
    %31 = arith.mulf %26, %30 : vector<8x32xf32>
    %32 = arith.addf %1, %31 : vector<8x32xf32>
    %c1_i32 = arith.constant 1 : i32
    %33 = arith.index_cast %c1_i32 : i32 to index
    %c0_10 = arith.constant 0 : index
    %c0_11 = arith.constant 0 : index
    %34 = vector.load %arg0[%33, %c0_10, %c0_11] : memref<8x8x128xf32, #tpu.memory_space<vmem>>, vector<1x8x128xf32>
    %35 = vector.shape_cast %34 : vector<1x8x128xf32> to vector<8x128xf32>
    %36 = arith.truncf %32 : vector<8x32xf32> to vector<8x32xbf16>
    %cst_12 = arith.constant dense<0.000000e+00> : vector<8x128xf32>
    %37 = tpu.matmul %36, %0, %cst_12 {dimension_numbers = #tpu.dot_dimension_numbers<[1], [0], [0], [1], [0, 0, 1, 1], [], []>} : vector<8x32xbf16>, vector<32x128xbf16>, vector<8x128xf32> -> vector<8x128xf32>
    %38 = arith.addf %35, %37 : vector<8x128xf32>
    %39 = arith.negf %38 : vector<8x128xf32>
    %40 = math.exp %39 : vector<8x128xf32>
    %cst_13 = arith.constant 1.000000e+00 : f32
    %41 = vector.broadcast %cst_13 : f32 to vector<8x128xf32>
    %42 = arith.addf %41, %40 : vector<8x128xf32>
    %43 = arith.divf %41, %42 : vector<8x128xf32>
    %44 = math.tanh %38 : vector<8x128xf32>
    %45 = vector.extract_strided_slice %43 {offsets = [0, 0], sizes = [8, 32], strides = [1, 1]} : vector<8x128xf32> to vector<8x32xf32>
    %46 = vector.extract_strided_slice %43 {offsets = [0, 32], sizes = [8, 32], strides = [1, 1]} : vector<8x128xf32> to vector<8x32xf32>
    %47 = vector.extract_strided_slice %44 {offsets = [0, 64], sizes = [8, 32], strides = [1, 1]} : vector<8x128xf32> to vector<8x32xf32>
    %48 = vector.extract_strided_slice %43 {offsets = [0, 96], sizes = [8, 32], strides = [1, 1]} : vector<8x128xf32> to vector<8x32xf32>
    %49 = arith.mulf %46, %29 : vector<8x32xf32>
    %50 = arith.mulf %45, %47 : vector<8x32xf32>
    %51 = arith.addf %49, %50 : vector<8x32xf32>
    %52 = math.tanh %51 : vector<8x32xf32>
    %53 = arith.mulf %48, %52 : vector<8x32xf32>
    %54 = arith.index_cast %c1_i32 : i32 to index
    %c0_14 = arith.constant 0 : index
    %c0_15 = arith.constant 0 : index
    %55 = vector.load %arg1[%54, %c0_14, %c0_15] : memref<8x8x32xf32, #tpu.memory_space<vmem>>, vector<1x8x32xf32>
    %56 = vector.shape_cast %55 : vector<1x8x32xf32> to vector<8x32xf32>
    %57 = arith.subf %51, %29 : vector<8x32xf32>
    %58 = arith.mulf %56, %57 : vector<8x32xf32>
    %59 = arith.addf %29, %58 : vector<8x32xf32>
    %60 = arith.subf %53, %32 : vector<8x32xf32>
    %61 = arith.mulf %56, %60 : vector<8x32xf32>
    %62 = arith.addf %32, %61 : vector<8x32xf32>
    %c2_i32 = arith.constant 2 : i32
    %63 = arith.index_cast %c2_i32 : i32 to index
    %c0_16 = arith.constant 0 : index
    %c0_17 = arith.constant 0 : index
    %64 = vector.load %arg0[%63, %c0_16, %c0_17] : memref<8x8x128xf32, #tpu.memory_space<vmem>>, vector<1x8x128xf32>
    %65 = vector.shape_cast %64 : vector<1x8x128xf32> to vector<8x128xf32>
    %66 = arith.truncf %62 : vector<8x32xf32> to vector<8x32xbf16>
    %cst_18 = arith.constant dense<0.000000e+00> : vector<8x128xf32>
    %67 = tpu.matmul %66, %0, %cst_18 {dimension_numbers = #tpu.dot_dimension_numbers<[1], [0], [0], [1], [0, 0, 1, 1], [], []>} : vector<8x32xbf16>, vector<32x128xbf16>, vector<8x128xf32> -> vector<8x128xf32>
    %68 = arith.addf %65, %67 : vector<8x128xf32>
    %69 = arith.negf %68 : vector<8x128xf32>
    %70 = math.exp %69 : vector<8x128xf32>
    %cst_19 = arith.constant 1.000000e+00 : f32
    %71 = vector.broadcast %cst_19 : f32 to vector<8x128xf32>
    %72 = arith.addf %71, %70 : vector<8x128xf32>
    %73 = arith.divf %71, %72 : vector<8x128xf32>
    %74 = math.tanh %68 : vector<8x128xf32>
    %75 = vector.extract_strided_slice %73 {offsets = [0, 0], sizes = [8, 32], strides = [1, 1]} : vector<8x128xf32> to vector<8x32xf32>
    %76 = vector.extract_strided_slice %73 {offsets = [0, 32], sizes = [8, 32], strides = [1, 1]} : vector<8x128xf32> to vector<8x32xf32>
    %77 = vector.extract_strided_slice %74 {offsets = [0, 64], sizes = [8, 32], strides = [1, 1]} : vector<8x128xf32> to vector<8x32xf32>
    %78 = vector.extract_strided_slice %73 {offsets = [0, 96], sizes = [8, 32], strides = [1, 1]} : vector<8x128xf32> to vector<8x32xf32>
    %79 = arith.mulf %76, %59 : vector<8x32xf32>
    %80 = arith.mulf %75, %77 : vector<8x32xf32>
    %81 = arith.addf %79, %80 : vector<8x32xf32>
    %82 = math.tanh %81 : vector<8x32xf32>
    %83 = arith.mulf %78, %82 : vector<8x32xf32>
    %84 = arith.index_cast %c2_i32 : i32 to index
    %c0_20 = arith.constant 0 : index
    %c0_21 = arith.constant 0 : index
    %85 = vector.load %arg1[%84, %c0_20, %c0_21] : memref<8x8x32xf32, #tpu.memory_space<vmem>>, vector<1x8x32xf32>
    %86 = vector.shape_cast %85 : vector<1x8x32xf32> to vector<8x32xf32>
    %87 = arith.subf %81, %59 : vector<8x32xf32>
    %88 = arith.mulf %86, %87 : vector<8x32xf32>
    %89 = arith.addf %59, %88 : vector<8x32xf32>
    %90 = arith.subf %83, %62 : vector<8x32xf32>
    %91 = arith.mulf %86, %90 : vector<8x32xf32>
    %92 = arith.addf %62, %91 : vector<8x32xf32>
    %c3_i32 = arith.constant 3 : i32
    %93 = arith.index_cast %c3_i32 : i32 to index
    %c0_22 = arith.constant 0 : index
    %c0_23 = arith.constant 0 : index
    %94 = vector.load %arg0[%93, %c0_22, %c0_23] : memref<8x8x128xf32, #tpu.memory_space<vmem>>, vector<1x8x128xf32>
    %95 = vector.shape_cast %94 : vector<1x8x128xf32> to vector<8x128xf32>
    %96 = arith.truncf %92 : vector<8x32xf32> to vector<8x32xbf16>
    %cst_24 = arith.constant dense<0.000000e+00> : vector<8x128xf32>
    %97 = tpu.matmul %96, %0, %cst_24 {dimension_numbers = #tpu.dot_dimension_numbers<[1], [0], [0], [1], [0, 0, 1, 1], [], []>} : vector<8x32xbf16>, vector<32x128xbf16>, vector<8x128xf32> -> vector<8x128xf32>
    %98 = arith.addf %95, %97 : vector<8x128xf32>
    %99 = arith.negf %98 : vector<8x128xf32>
    %100 = math.exp %99 : vector<8x128xf32>
    %cst_25 = arith.constant 1.000000e+00 : f32
    %101 = vector.broadcast %cst_25 : f32 to vector<8x128xf32>
    %102 = arith.addf %101, %100 : vector<8x128xf32>
    %103 = arith.divf %101, %102 : vector<8x128xf32>
    %104 = math.tanh %98 : vector<8x128xf32>
    %105 = vector.extract_strided_slice %103 {offsets = [0, 0], sizes = [8, 32], strides = [1, 1]} : vector<8x128xf32> to vector<8x32xf32>
    %106 = vector.extract_strided_slice %103 {offsets = [0, 32], sizes = [8, 32], strides = [1, 1]} : vector<8x128xf32> to vector<8x32xf32>
    %107 = vector.extract_strided_slice %104 {offsets = [0, 64], sizes = [8, 32], strides = [1, 1]} : vector<8x128xf32> to vector<8x32xf32>
    %108 = vector.extract_strided_slice %103 {offsets = [0, 96], sizes = [8, 32], strides = [1, 1]} : vector<8x128xf32> to vector<8x32xf32>
    %109 = arith.mulf %106, %89 : vector<8x32xf32>
    %110 = arith.mulf %105, %107 : vector<8x32xf32>
    %111 = arith.addf %109, %110 : vector<8x32xf32>
    %112 = math.tanh %111 : vector<8x32xf32>
    %113 = arith.mulf %108, %112 : vector<8x32xf32>
    %114 = arith.index_cast %c3_i32 : i32 to index
    %c0_26 = arith.constant 0 : index
    %c0_27 = arith.constant 0 : index
    %115 = vector.load %arg1[%114, %c0_26, %c0_27] : memref<8x8x32xf32, #tpu.memory_space<vmem>>, vector<1x8x32xf32>
    %116 = vector.shape_cast %115 : vector<1x8x32xf32> to vector<8x32xf32>
    %117 = arith.subf %111, %89 : vector<8x32xf32>
    %118 = arith.mulf %116, %117 : vector<8x32xf32>
    %119 = arith.addf %89, %118 : vector<8x32xf32>
    %120 = arith.subf %113, %92 : vector<8x32xf32>
    %121 = arith.mulf %116, %120 : vector<8x32xf32>
    %122 = arith.addf %92, %121 : vector<8x32xf32>
    %c4_i32 = arith.constant 4 : i32
    %123 = arith.index_cast %c4_i32 : i32 to index
    %c0_28 = arith.constant 0 : index
    %c0_29 = arith.constant 0 : index
    %124 = vector.load %arg0[%123, %c0_28, %c0_29] : memref<8x8x128xf32, #tpu.memory_space<vmem>>, vector<1x8x128xf32>
    %125 = vector.shape_cast %124 : vector<1x8x128xf32> to vector<8x128xf32>
    %126 = arith.truncf %122 : vector<8x32xf32> to vector<8x32xbf16>
    %cst_30 = arith.constant dense<0.000000e+00> : vector<8x128xf32>
    %127 = tpu.matmul %126, %0, %cst_30 {dimension_numbers = #tpu.dot_dimension_numbers<[1], [0], [0], [1], [0, 0, 1, 1], [], []>} : vector<8x32xbf16>, vector<32x128xbf16>, vector<8x128xf32> -> vector<8x128xf32>
    %128 = arith.addf %125, %127 : vector<8x128xf32>
    %129 = arith.negf %128 : vector<8x128xf32>
    %130 = math.exp %129 : vector<8x128xf32>
    %cst_31 = arith.constant 1.000000e+00 : f32
    %131 = vector.broadcast %cst_31 : f32 to vector<8x128xf32>
    %132 = arith.addf %131, %130 : vector<8x128xf32>
    %133 = arith.divf %131, %132 : vector<8x128xf32>
    %134 = math.tanh %128 : vector<8x128xf32>
    %135 = vector.extract_strided_slice %133 {offsets = [0, 0], sizes = [8, 32], strides = [1, 1]} : vector<8x128xf32> to vector<8x32xf32>
    %136 = vector.extract_strided_slice %133 {offsets = [0, 32], sizes = [8, 32], strides = [1, 1]} : vector<8x128xf32> to vector<8x32xf32>
    %137 = vector.extract_strided_slice %134 {offsets = [0, 64], sizes = [8, 32], strides = [1, 1]} : vector<8x128xf32> to vector<8x32xf32>
    %138 = vector.extract_strided_slice %133 {offsets = [0, 96], sizes = [8, 32], strides = [1, 1]} : vector<8x128xf32> to vector<8x32xf32>
    %139 = arith.mulf %136, %119 : vector<8x32xf32>
    %140 = arith.mulf %135, %137 : vector<8x32xf32>
    %141 = arith.addf %139, %140 : vector<8x32xf32>
    %142 = math.tanh %141 : vector<8x32xf32>
    %143 = arith.mulf %138, %142 : vector<8x32xf32>
    %144 = arith.index_cast %c4_i32 : i32 to index
    %c0_32 = arith.constant 0 : index
    %c0_33 = arith.constant 0 : index
    %145 = vector.load %arg1[%144, %c0_32, %c0_33] : memref<8x8x32xf32, #tpu.memory_space<vmem>>, vector<1x8x32xf32>
    %146 = vector.shape_cast %145 : vector<1x8x32xf32> to vector<8x32xf32>
    %147 = arith.subf %141, %119 : vector<8x32xf32>
    %148 = arith.mulf %146, %147 : vector<8x32xf32>
    %149 = arith.addf %119, %148 : vector<8x32xf32>
    %150 = arith.subf %143, %122 : vector<8x32xf32>
    %151 = arith.mulf %146, %150 : vector<8x32xf32>
    %152 = arith.addf %122, %151 : vector<8x32xf32>
    %c5_i32 = arith.constant 5 : i32
    %153 = arith.index_cast %c5_i32 : i32 to index
    %c0_34 = arith.constant 0 : index
    %c0_35 = arith.constant 0 : index
    %154 = vector.load %arg0[%153, %c0_34, %c0_35] : memref<8x8x128xf32, #tpu.memory_space<vmem>>, vector<1x8x128xf32>
    %155 = vector.shape_cast %154 : vector<1x8x128xf32> to vector<8x128xf32>
    %156 = arith.truncf %152 : vector<8x32xf32> to vector<8x32xbf16>
    %cst_36 = arith.constant dense<0.000000e+00> : vector<8x128xf32>
    %157 = tpu.matmul %156, %0, %cst_36 {dimension_numbers = #tpu.dot_dimension_numbers<[1], [0], [0], [1], [0, 0, 1, 1], [], []>} : vector<8x32xbf16>, vector<32x128xbf16>, vector<8x128xf32> -> vector<8x128xf32>
    %158 = arith.addf %155, %157 : vector<8x128xf32>
    %159 = arith.negf %158 : vector<8x128xf32>
    %160 = math.exp %159 : vector<8x128xf32>
    %cst_37 = arith.constant 1.000000e+00 : f32
    %161 = vector.broadcast %cst_37 : f32 to vector<8x128xf32>
    %162 = arith.addf %161, %160 : vector<8x128xf32>
    %163 = arith.divf %161, %162 : vector<8x128xf32>
    %164 = math.tanh %158 : vector<8x128xf32>
    %165 = vector.extract_strided_slice %163 {offsets = [0, 0], sizes = [8, 32], strides = [1, 1]} : vector<8x128xf32> to vector<8x32xf32>
    %166 = vector.extract_strided_slice %163 {offsets = [0, 32], sizes = [8, 32], strides = [1, 1]} : vector<8x128xf32> to vector<8x32xf32>
    %167 = vector.extract_strided_slice %164 {offsets = [0, 64], sizes = [8, 32], strides = [1, 1]} : vector<8x128xf32> to vector<8x32xf32>
    %168 = vector.extract_strided_slice %163 {offsets = [0, 96], sizes = [8, 32], strides = [1, 1]} : vector<8x128xf32> to vector<8x32xf32>
    %169 = arith.mulf %166, %149 : vector<8x32xf32>
    %170 = arith.mulf %165, %167 : vector<8x32xf32>
    %171 = arith.addf %169, %170 : vector<8x32xf32>
    %172 = math.tanh %171 : vector<8x32xf32>
    %173 = arith.mulf %168, %172 : vector<8x32xf32>
    %174 = arith.index_cast %c5_i32 : i32 to index
    %c0_38 = arith.constant 0 : index
    %c0_39 = arith.constant 0 : index
    %175 = vector.load %arg1[%174, %c0_38, %c0_39] : memref<8x8x32xf32, #tpu.memory_space<vmem>>, vector<1x8x32xf32>
    %176 = vector.shape_cast %175 : vector<1x8x32xf32> to vector<8x32xf32>
    %177 = arith.subf %171, %149 : vector<8x32xf32>
    %178 = arith.mulf %176, %177 : vector<8x32xf32>
    %179 = arith.addf %149, %178 : vector<8x32xf32>
    %180 = arith.subf %173, %152 : vector<8x32xf32>
    %181 = arith.mulf %176, %180 : vector<8x32xf32>
    %182 = arith.addf %152, %181 : vector<8x32xf32>
    %c6_i32 = arith.constant 6 : i32
    %183 = arith.index_cast %c6_i32 : i32 to index
    %c0_40 = arith.constant 0 : index
    %c0_41 = arith.constant 0 : index
    %184 = vector.load %arg0[%183, %c0_40, %c0_41] : memref<8x8x128xf32, #tpu.memory_space<vmem>>, vector<1x8x128xf32>
    %185 = vector.shape_cast %184 : vector<1x8x128xf32> to vector<8x128xf32>
    %186 = arith.truncf %182 : vector<8x32xf32> to vector<8x32xbf16>
    %cst_42 = arith.constant dense<0.000000e+00> : vector<8x128xf32>
    %187 = tpu.matmul %186, %0, %cst_42 {dimension_numbers = #tpu.dot_dimension_numbers<[1], [0], [0], [1], [0, 0, 1, 1], [], []>} : vector<8x32xbf16>, vector<32x128xbf16>, vector<8x128xf32> -> vector<8x128xf32>
    %188 = arith.addf %185, %187 : vector<8x128xf32>
    %189 = arith.negf %188 : vector<8x128xf32>
    %190 = math.exp %189 : vector<8x128xf32>
    %cst_43 = arith.constant 1.000000e+00 : f32
    %191 = vector.broadcast %cst_43 : f32 to vector<8x128xf32>
    %192 = arith.addf %191, %190 : vector<8x128xf32>
    %193 = arith.divf %191, %192 : vector<8x128xf32>
    %194 = math.tanh %188 : vector<8x128xf32>
    %195 = vector.extract_strided_slice %193 {offsets = [0, 0], sizes = [8, 32], strides = [1, 1]} : vector<8x128xf32> to vector<8x32xf32>
    %196 = vector.extract_strided_slice %193 {offsets = [0, 32], sizes = [8, 32], strides = [1, 1]} : vector<8x128xf32> to vector<8x32xf32>
    %197 = vector.extract_strided_slice %194 {offsets = [0, 64], sizes = [8, 32], strides = [1, 1]} : vector<8x128xf32> to vector<8x32xf32>
    %198 = vector.extract_strided_slice %193 {offsets = [0, 96], sizes = [8, 32], strides = [1, 1]} : vector<8x128xf32> to vector<8x32xf32>
    %199 = arith.mulf %196, %179 : vector<8x32xf32>
    %200 = arith.mulf %195, %197 : vector<8x32xf32>
    %201 = arith.addf %199, %200 : vector<8x32xf32>
    %202 = math.tanh %201 : vector<8x32xf32>
    %203 = arith.mulf %198, %202 : vector<8x32xf32>
    %204 = arith.index_cast %c6_i32 : i32 to index
    %c0_44 = arith.constant 0 : index
    %c0_45 = arith.constant 0 : index
    %205 = vector.load %arg1[%204, %c0_44, %c0_45] : memref<8x8x32xf32, #tpu.memory_space<vmem>>, vector<1x8x32xf32>
    %206 = vector.shape_cast %205 : vector<1x8x32xf32> to vector<8x32xf32>
    %207 = arith.subf %201, %179 : vector<8x32xf32>
    %208 = arith.mulf %206, %207 : vector<8x32xf32>
    %209 = arith.addf %179, %208 : vector<8x32xf32>
    %210 = arith.subf %203, %182 : vector<8x32xf32>
    %211 = arith.mulf %206, %210 : vector<8x32xf32>
    %212 = arith.addf %182, %211 : vector<8x32xf32>
    %c7_i32 = arith.constant 7 : i32
    %213 = arith.index_cast %c7_i32 : i32 to index
    %c0_46 = arith.constant 0 : index
    %c0_47 = arith.constant 0 : index
    %214 = vector.load %arg0[%213, %c0_46, %c0_47] : memref<8x8x128xf32, #tpu.memory_space<vmem>>, vector<1x8x128xf32>
    %215 = vector.shape_cast %214 : vector<1x8x128xf32> to vector<8x128xf32>
    %216 = arith.truncf %212 : vector<8x32xf32> to vector<8x32xbf16>
    %cst_48 = arith.constant dense<0.000000e+00> : vector<8x128xf32>
    %217 = tpu.matmul %216, %0, %cst_48 {dimension_numbers = #tpu.dot_dimension_numbers<[1], [0], [0], [1], [0, 0, 1, 1], [], []>} : vector<8x32xbf16>, vector<32x128xbf16>, vector<8x128xf32> -> vector<8x128xf32>
    %218 = arith.addf %215, %217 : vector<8x128xf32>
    %219 = arith.negf %218 : vector<8x128xf32>
    %220 = math.exp %219 : vector<8x128xf32>
    %cst_49 = arith.constant 1.000000e+00 : f32
    %221 = vector.broadcast %cst_49 : f32 to vector<8x128xf32>
    %222 = arith.addf %221, %220 : vector<8x128xf32>
    %223 = arith.divf %221, %222 : vector<8x128xf32>
    %224 = math.tanh %218 : vector<8x128xf32>
    %225 = vector.extract_strided_slice %223 {offsets = [0, 0], sizes = [8, 32], strides = [1, 1]} : vector<8x128xf32> to vector<8x32xf32>
    %226 = vector.extract_strided_slice %223 {offsets = [0, 32], sizes = [8, 32], strides = [1, 1]} : vector<8x128xf32> to vector<8x32xf32>
    %227 = vector.extract_strided_slice %224 {offsets = [0, 64], sizes = [8, 32], strides = [1, 1]} : vector<8x128xf32> to vector<8x32xf32>
    %228 = vector.extract_strided_slice %223 {offsets = [0, 96], sizes = [8, 32], strides = [1, 1]} : vector<8x128xf32> to vector<8x32xf32>
    %229 = arith.mulf %226, %209 : vector<8x32xf32>
    %230 = arith.mulf %225, %227 : vector<8x32xf32>
    %231 = arith.addf %229, %230 : vector<8x32xf32>
    %232 = math.tanh %231 : vector<8x32xf32>
    %233 = arith.mulf %228, %232 : vector<8x32xf32>
    %234 = arith.index_cast %c7_i32 : i32 to index
    %c0_50 = arith.constant 0 : index
    %c0_51 = arith.constant 0 : index
    %235 = vector.load %arg1[%234, %c0_50, %c0_51] : memref<8x8x32xf32, #tpu.memory_space<vmem>>, vector<1x8x32xf32>
    %236 = vector.shape_cast %235 : vector<1x8x32xf32> to vector<8x32xf32>
    %237 = arith.subf %231, %209 : vector<8x32xf32>
    %238 = arith.mulf %236, %237 : vector<8x32xf32>
    %239 = arith.addf %209, %238 : vector<8x32xf32>
    %240 = arith.subf %233, %212 : vector<8x32xf32>
    %241 = arith.mulf %236, %240 : vector<8x32xf32>
    %242 = arith.addf %212, %241 : vector<8x32xf32>
    %c8_i32 = arith.constant 8 : i32
    %c0_52 = arith.constant 0 : index
    %c0_53 = arith.constant 0 : index
    %243 = vector.load %arg5[%c0_52, %c0_53] : memref<1x32xf32, #tpu.memory_space<vmem>>, vector<1x32xf32>
    %244 = vector.broadcast %243 : vector<1x32xf32> to vector<8x32xf32>
    %245 = arith.mulf %242, %244 : vector<8x32xf32>
    %cst_54 = arith.constant dense<0.000000e+00> : vector<8xf32>
    %246 = vector.multi_reduction <add>, %245, %cst_54 [1] : vector<8x32xf32> to vector<8xf32>
    %247 = vector.shape_cast %246 : vector<8xf32> to vector<8x1xf32>
    %c0_55 = arith.constant 0 : index
    %c0_56 = arith.constant 0 : index
    %248 = vector.load %arg6[%c0_55, %c0_56] : memref<1x1xf32, #tpu.memory_space<vmem>>, vector<1x1xf32>
    %249 = vector.broadcast %248 : vector<1x1xf32> to vector<8x1xf32>
    %250 = arith.addf %247, %249 : vector<8x1xf32>
    %cst_57 = arith.constant 0.000000e+00 : f32
    %251 = vector.broadcast %cst_57 : f32 to vector<8x1xf32>
    %252 = arith.maximumf %250, %251 : vector<8x1xf32>
    %c0_58 = arith.constant 0 : index
    %c0_59 = arith.constant 0 : index
    %253 = vector.load %arg7[%c0_58, %c0_59] : memref<8x1xf32, #tpu.memory_space<vmem>>, vector<8x1xf32>
    tpu.vector_store %arg7[%c0_58, %c0_59], %252 {strides = array<i32>} : memref<8x1xf32, #tpu.memory_space<vmem>>, vector<8x1xf32>,
    return
  }
}

</mosaic_0001>

<llo_original>
// kernel: tpu_custom_call.1
$region0: #{tpu_custom_call.1}
  #allocation0 [shape = 'u32[]', space=smem, size = 0x4, offset = 0x4, fixed_abs, tag = 'smem constant byte address 0x4 - core index']
  #allocation1 [shape = 'u32[72,128]{1,0:T(1,128)}', space=vmem, size = 0x9000, scoped, tag = 'internal scratch']
  #allocation2 [shape = 'f32[1,1]{1,0:T(1,128)S(1)}', space=vmem, size = 0x200, scoped, tag = 'scoped memory for tpu_custom_call.1']
  %s0 = inlined_call_operand.hbm [shape: f32[8,8,128], index: 0, kind: input, shape index: {}]
  %s1 = inlined_call_operand.hbm [shape: f32[8,8,32], index: 1, kind: input, shape index: {}]
  %s2 = inlined_call_operand.hbm [shape: f32[8,32], index: 2, kind: input, shape index: {}]
  %s3 = inlined_call_operand.hbm [shape: f32[8,32], index: 3, kind: input, shape index: {}]
  %s4 = inlined_call_operand.hbm [shape: bf16[32,128], index: 4, kind: input, shape index: {}]
  %s5 = inlined_call_operand.vmem [shape: f32[1,32], index: 5, kind: input, shape index: {}]
  %s6 = inlined_call_operand.<no memory space> [shape: f32[1,1], index: 6, kind: input, shape index: {}]
  %s7 = inlined_call_operand.vmem [shape: f32[8,1], index: 7, kind: output, shape index: {}]
  %s8 = sld [smem:[#allocation0]]
  $region58: #{tpu_custom_call.1} parent=0
    _
  %s10 = ssub.s32 1, %s8
  %s11 = scalar_select 0, %s10, %s8
  %v12 = vstv %s6
  %13 = vst [vmem:[#allocation2] sm:$0x1] %v12
  $region1: #{tpu_custom_call.1} parent=0
    #allocation3 [shape = 'u8[32768]{0}', space=vmem, size = 0x8000, scoped, tag = 'input window, operand 0, single buffered']
    #allocation4 [shape = 's32[1]{0}', space=sflag, size = 0x4, scoped, tag = 'scoped memory for tpu_custom_call.1']
    #allocation5 [shape = 'u8[32768]{0}', space=vmem, size = 0x8000, scoped, tag = 'input window, operand 1, single buffered']
    #allocation6 [shape = 's32[1]{0}', space=sflag, size = 0x4, scoped, tag = 'scoped memory for tpu_custom_call.1']
    #allocation7 [shape = 'u8[4096]{0}', space=vmem, size = 0x1000, scoped, tag = 'input window, operand 2, single buffered']
    #allocation8 [shape = 'u8[4096]{0}', space=vmem, size = 0x1000, scoped, tag = 'input window, operand 3, single buffered']
    #allocation9 [shape = 's32[1]{0}', space=sflag, size = 0x4, scoped, tag = 'scoped memory for tpu_custom_call.1']
    #allocation10 [shape = 'u8[8192]{0}', space=vmem, size = 0x2000, scoped, tag = 'input window, operand 4, single buffered']
    %14 = vsyncpa [#allocation4], 0
    %15 = vsyncpa [#allocation6], 0
    %16 = vsyncpa [#allocation9], 0
    // Predicated region
    $region2: #{tpu_custom_call.1} parent=1 // pred_check
      _
    $region3: #{tpu_custom_call.1} parent=1 // pred_check_branch
      %18 = sbr.rel (0) target = $region5
    $region4: #{tpu_custom_call.1} parent=1 // pred_region
      %20 = vsyncadd [#allocation4], 0
      %s21 = sshll.u32 %s0, 4
      %s22 = int_to_ptr.hbm [resolvable:$true] %s21
      %s23 = sshll.u32 [#allocation3], 4
      %s24 = int_to_ptr.vmem [resolvable:$true] %s23
      %29 = dma.hbm_to_vmem [thread:$0]  %s22, 1024, %s24, [#allocation4], 128, 128, 8
    $region5: #{tpu_custom_call.1} parent=1 // pred_fallthru
      _
    // Predicated region
    $region6: #{tpu_custom_call.1} parent=1 // pred_check
      _
    $region7: #{tpu_custom_call.1} parent=1 // pred_check_branch
      %31 = sbr.rel (0) target = $region9
    $region8: #{tpu_custom_call.1} parent=1 // pred_region
      %33 = vsyncadd [#allocation6], 0
      %s34 = sshll.u32 %s1, 4
      %s35 = int_to_ptr.hbm [resolvable:$true] %s34
      %s36 = sshll.u32 [#allocation5], 4
      %s37 = int_to_ptr.vmem [resolvable:$true] %s36
      %42 = dma.hbm_to_vmem [thread:$0]  %s35, 1024, %s37, [#allocation6], 128, 128, 8
    $region9: #{tpu_custom_call.1} parent=1 // pred_fallthru
      _
    // Predicated region
    $region10: #{tpu_custom_call.1} parent=1 // pred_check
      _
    $region11: #{tpu_custom_call.1} parent=1 // pred_check_branch
      %44 = sbr.rel (0) target = $region13
    $region12: #{tpu_custom_call.1} parent=1 // pred_region
      %46 = vsyncadd [#allocation6], 0
      %s48 = sshll.u32 %s2, 4
      %s49 = int_to_ptr.hbm [resolvable:$true] %s48
      %s50 = sshll.u32 [#allocation7], 4
      %s51 = int_to_ptr.vmem [resolvable:$true] %s50
      %53 = dma.hbm_to_vmem [thread:$0]  %s49, 128, %s51, [#allocation6]
    $region13: #{tpu_custom_call.1} parent=1 // pred_fallthru
      _
    // Predicated region
    $region14: #{tpu_custom_call.1} parent=1 // pred_check
      _
    $region15: #{tpu_custom_call.1} parent=1 // pred_check_branch
      %55 = sbr.rel (0) target = $region17
    $region16: #{tpu_custom_call.1} parent=1 // pred_region
      %57 = vsyncadd [#allocation9], 0
      %s59 = sshll.u32 %s3, 4
      %s60 = int_to_ptr.hbm [resolvable:$true] %s59
      %s61 = sshll.u32 [#allocation8], 4
      %s62 = int_to_ptr.vmem [resolvable:$true] %s61
      %64 = dma.hbm_to_vmem [thread:$0]  %s60, 128, %s62, [#allocation9]
    $region17: #{tpu_custom_call.1} parent=1 // pred_fallthru
      _
    // Predicated region
    $region18: #{tpu_custom_call.1} parent=1 // pred_check
      _
    $region19: #{tpu_custom_call.1} parent=1 // pred_check_branch
      %66 = sbr.rel (0) target = $region21
    $region20: #{tpu_custom_call.1} parent=1 // pred_region
      %68 = vsyncadd [#allocation9], 0
      %s69 = sshll.u32 %s4, 4
      %s70 = int_to_ptr.hbm [resolvable:$true] %s69
      %s71 = sshll.u32 [#allocation10], 4
      %s72 = int_to_ptr.vmem [resolvable:$true] %s71
      %77 = dma.hbm_to_vmem [thread:$0]  %s70, 256, %s72, [#allocation9], 64, 64, 4
    $region21: #{tpu_custom_call.1} parent=1 // pred_fallthru
      _
    // Predicated region
    $region22: #{tpu_custom_call.1} parent=1 // pred_check
      _
    $region23: #{tpu_custom_call.1} parent=1 // pred_check_branch
      %79 = sbr.rel (0) target = $region25
    $region24: #{tpu_custom_call.1} parent=1 // pred_region
      _
    $region25: #{tpu_custom_call.1} parent=1 // pred_fallthru
      _
    // Predicated region
    $region26: #{tpu_custom_call.1} parent=1 // pred_check
      _
    $region27: #{tpu_custom_call.1} parent=1 // pred_check_branch
      %81 = sbr.rel (0) target = $region29
    $region28: #{tpu_custom_call.1} parent=1 // pred_region
      _
    $region29: #{tpu_custom_call.1} parent=1 // pred_fallthru
      _
    // Predicated region
    $region30: #{tpu_custom_call.1} parent=1 // pred_check
      _
    $region31: #{tpu_custom_call.1} parent=1 // pred_check_branch
      %83 = sbr.rel (0) target = $region33
    $region32: #{tpu_custom_call.1} parent=1 // pred_region
      %85 = dma.done [#allocation4], 1024
    $region33: #{tpu_custom_call.1} parent=1 // pred_fallthru
      _
    // Predicated region
    $region34: #{tpu_custom_call.1} parent=1 // pred_check
      _
    $region35: #{tpu_custom_call.1} parent=1 // pred_check_branch
      %87 = sbr.rel (0) target = $region37
    $region36: #{tpu_custom_call.1} parent=1 // pred_region
      %89 = dma.done [#allocation6], 1024
    $region37: #{tpu_custom_call.1} parent=1 // pred_fallthru
      _
    // Predicated region
    $region38: #{tpu_custom_call.1} parent=1 // pred_check
      _
    $region39: #{tpu_custom_call.1} parent=1 // pred_check_branch
      %91 = sbr.rel (0) target = $region41
    $region40: #{tpu_custom_call.1} parent=1 // pred_region
      %93 = dma.done [#allocation6], 128
    $region41: #{tpu_custom_call.1} parent=1 // pred_fallthru
      _
    // Predicated region
    $region42: #{tpu_custom_call.1} parent=1 // pred_check
      _
    $region43: #{tpu_custom_call.1} parent=1 // pred_check_branch
      %95 = sbr.rel (0) target = $region45
    $region44: #{tpu_custom_call.1} parent=1 // pred_region
      %97 = dma.done [#allocation9], 128
    $region45: #{tpu_custom_call.1} parent=1 // pred_fallthru
      _
    // Predicated region
    $region46: #{tpu_custom_call.1} parent=1 // pred_check
      _
    $region47: #{tpu_custom_call.1} parent=1 // pred_check_branch
      %99 = sbr.rel (0) target = $region49
    $region48: #{tpu_custom_call.1} parent=1 // pred_region
      %101 = dma.done [#allocation9], 256
    $region49: #{tpu_custom_call.1} parent=1 // pred_fallthru
      _
    %v103 = vld [vmem:[#allocation10] sm:$0xf]
    %v104 = vld [vmem:[#allocation10 + $0x4] sm:$0xf]
    %v105 = vld [vmem:[#allocation10 + $0x8] sm:$0xf]
    %v106 = vld [vmem:[#allocation10 + $0xc] sm:$0xf]
    %v107 = vld [vmem:[#allocation7] sm:$0xff]
    %v108 = vld [vmem:[#allocation8] sm:$0xff]
    %v109 = vld [vmem:[#allocation3] sm:$0xff]
    %v110 = vpack.c.bf16 %v107, %v107
    %v115 = vunpack.c.l.b16 %v103
    %v116 = vunpack.c.l.b16 %v104
    %v117 = vunpack.c.l.b16 %v105
    %v118 = vunpack.c.l.b16 %v106
    %v119 = vpack.c.b16 %v116, %v115
    %v120 = vpack.c.b16 %v118, %v117
    %vm123 = vcmask 261120
    %v125 = vsel %vm123, %v110, 0
    %127 = vmatpush.bf16.msra.mxu0 0
    %128 = vmatpush.bf16.msra.mxu0 0
    %129 = vmatpush.bf16.msra.mxu0 0
    %130 = vmatpush.bf16.msra.mxu0 0
    %131 = vmatpush.bf16.msra.mxu0 0
    %132 = vmatpush.bf16.msra.mxu0 0
    %133 = vmatpush.bf16.msra.mxu0 %v120
    %134 = vmatpush.bf16.msra.mxu0 %v119
    %135 = vmatmul.bf16.gmra.mxu0 %v125
    %v136 = vpop.f32.mrf.mxu0
    %v137 = vadd.f32 0.0, %v136
    %v138 = vpop.f32.mrf.mxu0
    %139 = vdwg.mxu0
    %v140 = vadd.f32 %v109, %v137
    %v141 = vxor.u32 %v140, 2147483648
    %v142 = vmul.f32 %v141, 1.442695
    %v143 = vpow.pop %v142
    %v144 = vadd.f32 %v143, 1.0
    %v145 = vrcp.pop %v144
    %v146 = vmul.f32 %v144, %v145
    %v147 = vsub.f32 1.0, %v146
    %v148 = vmul.f32 %v145, %v147
    %v149 = vadd.f32 %v145, %v148
    %vm150 = vweird.f32 %v144
    %vm151 = vweird.f32 %v145
    %vm152 = vmor %vm150, %vm151
    %v153 = vsel %vm152, %v145, %v149
    %v154 = vand.u32 2147483647, %v144
    %vm155 = vcmp.eq.f32.partialorder %v154, 8.507059e+37
    %v156 = vand.u32 %v144, 2147483648
    %v157 = vor.u32 1.1754944e-38, %v156
    %v158 = vsel %vm155, %v157, %v153
    %v159 = vmul.f32 1.0, %v158
    %v160 = vtanh.pop %v140
    %162 = vrot.lane.b32.xlu0 %v108, 32
    %v163 = vpop.permute.xlu0 %162
    %v165 = vmul.f32 %v159, %v163
    %167 = vrot.lane.b32.xlu0 %v160, 64
    %v168 = vpop.permute.xlu0 %167
    %v170 = vmul.f32 %v159, %v168
    %172 = vrot.lane.b32.xlu0 %v170, 32
    %v173 = vpop.permute.xlu0 %172
    %v175 = vadd.f32 %v165, %v173
    %v176 = vtanh.pop %v175
    %178 = vrot.lane.b32.xlu0 %v176, 64
    %v179 = vpop.permute.xlu0 %178
    %v181 = vmul.f32 %v159, %v179
    %v182 = vld [vmem:[#allocation5] sm:$0xff]
    %v183 = vsub.f32 %v175, %v163
    %185 = vrot.lane.b32.xlu0 %v183, 96
    %v186 = vpop.permute.xlu0 %185
    %v188 = vmul.f32 %v182, %v186
    %v189 = vadd.f32 %v108, %v188
    %191 = vrot.lane.b32.xlu0 %v107, 96
    %v192 = vpop.permute.xlu0 %191
    %v194 = vsub.f32 %v181, %v192
    %196 = vrot.lane.b32.xlu0 %v194, 32
    %v197 = vpop.permute.xlu0 %196
    %v199 = vmul.f32 %v182, %v197
    %v200 = vadd.f32 %v107, %v199
    %s201 = scalar_lea.vmem [#allocation3], 8
    %v202 = vld [vmem:[%s201] sm:$0xff]
    %v203 = vpack.c.bf16 %v200, %v200
    %v205 = vsel %vm123, %v203, 0
    %207 = vmatpush.bf16.msra.mxu0 0
    %208 = vmatpush.bf16.msra.mxu0 0
    %209 = vmatpush.bf16.msra.mxu0 0
    %210 = vmatpush.bf16.msra.mxu0 0
    %211 = vmatpush.bf16.msra.mxu0 0
    %212 = vmatpush.bf16.msra.mxu0 0
    %213 = vmatpush.bf16.msra.mxu0 %v120
    %214 = vmatpush.bf16.msra.mxu0 %v119
    %215 = vmatmul.bf16.gmra.mxu0 %v205
    %v216 = vpop.f32.mrf.mxu0
    %v217 = vadd.f32 0.0, %v216
    %v218 = vpop.f32.mrf.mxu0
    %219 = vdwg.mxu0
    %v220 = vadd.f32 %v202, %v217
    %v221 = vxor.u32 %v220, 2147483648
    %v222 = vmul.f32 %v221, 1.442695
    %v223 = vpow.pop %v222
    %v224 = vadd.f32 %v223, 1.0
    %v225 = vrcp.pop %v224
    %v226 = vmul.f32 %v224, %v225
    %v227 = vsub.f32 1.0, %v226
    %v228 = vmul.f32 %v225, %v227
    %v229 = vadd.f32 %v225, %v228
    %vm230 = vweird.f32 %v224
    %vm231 = vweird.f32 %v225
    %vm232 = vmor %vm230, %vm231
    %v233 = vsel %vm232, %v225, %v229
    %v234 = vand.u32 2147483647, %v224
    %vm235 = vcmp.eq.f32.partialorder %v234, 8.507059e+37
    %v236 = vand.u32 %v224, 2147483648
    %v237 = vor.u32 1.1754944e-38, %v236
    %v238 = vsel %vm235, %v237, %v233
    %v239 = vmul.f32 1.0, %v238
    %v240 = vtanh.pop %v220
    %242 = vrot.lane.b32.xlu0 %v189, 32
    %v243 = vpop.permute.xlu0 %242
    %v245 = vmul.f32 %v239, %v243
    %247 = vrot.lane.b32.xlu0 %v240, 64
    %v248 = vpop.permute.xlu0 %247
    %v250 = vmul.f32 %v239, %v248
    %252 = vrot.lane.b32.xlu0 %v250, 32
    %v253 = vpop.permute.xlu0 %252
    %v255 = vadd.f32 %v245, %v253
    %v256 = vtanh.pop %v255
    %258 = vrot.lane.b32.xlu0 %v256, 64
    %v259 = vpop.permute.xlu0 %258
    %v261 = vmul.f32 %v239, %v259
    %s262 = scalar_lea.vmem [#allocation5], 8
    %v263 = vld [vmem:[%s262] sm:$0xff]
    %v264 = vsub.f32 %v255, %v243
    %266 = vrot.lane.b32.xlu0 %v264, 96
    %v267 = vpop.permute.xlu0 %266
    %v269 = vmul.f32 %v263, %v267
    %v270 = vadd.f32 %v189, %v269
    %272 = vrot.lane.b32.xlu0 %v200, 96
    %v273 = vpop.permute.xlu0 %272
    %v275 = vsub.f32 %v261, %v273
    %277 = vrot.lane.b32.xlu0 %v275, 32
    %v278 = vpop.permute.xlu0 %277
    %v280 = vmul.f32 %v263, %v278
    %v281 = vadd.f32 %v200, %v280
    %s282 = scalar_lea.vmem [#allocation3], 16
    %v283 = vld [vmem:[%s282] sm:$0xff]
    %v284 = vpack.c.bf16 %v281, %v281
    %v286 = vsel %vm123, %v284, 0
    %288 = vmatpush.bf16.msra.mxu0 0
    %289 = vmatpush.bf16.msra.mxu0 0
    %290 = vmatpush.bf16.msra.mxu0 0
    %291 = vmatpush.bf16.msra.mxu0 0
    %292 = vmatpush.bf16.msra.mxu0 0
    %293 = vmatpush.bf16.msra.mxu0 0
    %294 = vmatpush.bf16.msra.mxu0 %v120
    %295 = vmatpush.bf16.msra.mxu0 %v119
    %296 = vmatmul.bf16.gmra.mxu0 %v286
    %v297 = vpop.f32.mrf.mxu0
    %v298 = vadd.f32 0.0, %v297
    %v299 = vpop.f32.mrf.mxu0
    %300 = vdwg.mxu0
    %v301 = vadd.f32 %v283, %v298
    %v302 = vxor.u32 %v301, 2147483648
    %v303 = vmul.f32 %v302, 1.442695
    %v304 = vpow.pop %v303
    %v305 = vadd.f32 %v304, 1.0
    %v306 = vrcp.pop %v305
    %v307 = vmul.f32 %v305, %v306
    %v308 = vsub.f32 1.0, %v307
    %v309 = vmul.f32 %v306, %v308
    %v310 = vadd.f32 %v306, %v309
    %vm311 = vweird.f32 %v305
    %vm312 = vweird.f32 %v306
    %vm313 = vmor %vm311, %vm312
    %v314 = vsel %vm313, %v306, %v310
    %v315 = vand.u32 2147483647, %v305
    %vm316 = vcmp.eq.f32.partialorder %v315, 8.507059e+37
    %v317 = vand.u32 %v305, 2147483648
    %v318 = vor.u32 1.1754944e-38, %v317
    %v319 = vsel %vm316, %v318, %v314
    %v320 = vmul.f32 1.0, %v319
    %v321 = vtanh.pop %v301
    %323 = vrot.lane.b32.xlu0 %v270, 32
    %v324 = vpop.permute.xlu0 %323
    %v326 = vmul.f32 %v320, %v324
    %328 = vrot.lane.b32.xlu0 %v321, 64
    %v329 = vpop.permute.xlu0 %328
    %v331 = vmul.f32 %v320, %v329
    %333 = vrot.lane.b32.xlu0 %v331, 32
    %v334 = vpop.permute.xlu0 %333
    %v336 = vadd.f32 %v326, %v334
    %v337 = vtanh.pop %v336
    %339 = vrot.lane.b32.xlu0 %v337, 64
    %v340 = vpop.permute.xlu0 %339
    %v342 = vmul.f32 %v320, %v340
    %s343 = scalar_lea.vmem [#allocation5], 16
    %v344 = vld [vmem:[%s343] sm:$0xff]
    %v345 = vsub.f32 %v336, %v324
    %347 = vrot.lane.b32.xlu0 %v345, 96
    %v348 = vpop.permute.xlu0 %347
    %v350 = vmul.f32 %v344, %v348
    %v351 = vadd.f32 %v270, %v350
    %353 = vrot.lane.b32.xlu0 %v281, 96
    %v354 = vpop.permute.xlu0 %353
    %v356 = vsub.f32 %v342, %v354
    %358 = vrot.lane.b32.xlu0 %v356, 32
    %v359 = vpop.permute.xlu0 %358
    %v361 = vmul.f32 %v344, %v359
    %v362 = vadd.f32 %v281, %v361
    %s363 = scalar_lea.vmem [#allocation3], 24
    %v364 = vld [vmem:[%s363] sm:$0xff]
    %v365 = vpack.c.bf16 %v362, %v362
    %v367 = vsel %vm123, %v365, 0
    %369 = vmatpush.bf16.msra.mxu0 0
    %370 = vmatpush.bf16.msra.mxu0 0
    %371 = vmatpush.bf16.msra.mxu0 0
    %372 = vmatpush.bf16.msra.mxu0 0
    %373 = vmatpush.bf16.msra.mxu0 0
    %374 = vmatpush.bf16.msra.mxu0 0
    %375 = vmatpush.bf16.msra.mxu0 %v120
    %376 = vmatpush.bf16.msra.mxu0 %v119
    %377 = vmatmul.bf16.gmra.mxu0 %v367
    %v378 = vpop.f32.mrf.mxu0
    %v379 = vadd.f32 0.0, %v378
    %v380 = vpop.f32.mrf.mxu0
    %381 = vdwg.mxu0
    %v382 = vadd.f32 %v364, %v379
    %v383 = vxor.u32 %v382, 2147483648
    %v384 = vmul.f32 %v383, 1.442695
    %v385 = vpow.pop %v384
    %v386 = vadd.f32 %v385, 1.0
    %v387 = vrcp.pop %v386
    %v388 = vmul.f32 %v386, %v387
    %v389 = vsub.f32 1.0, %v388
    %v390 = vmul.f32 %v387, %v389
    %v391 = vadd.f32 %v387, %v390
    %vm392 = vweird.f32 %v386
    %vm393 = vweird.f32 %v387
    %vm394 = vmor %vm392, %vm393
    %v395 = vsel %vm394, %v387, %v391
    %v396 = vand.u32 2147483647, %v386
    %vm397 = vcmp.eq.f32.partialorder %v396, 8.507059e+37
    %v398 = vand.u32 %v386, 2147483648
    %v399 = vor.u32 1.1754944e-38, %v398
    %v400 = vsel %vm397, %v399, %v395
    %v401 = vmul.f32 1.0, %v400
    %v402 = vtanh.pop %v382
    %404 = vrot.lane.b32.xlu0 %v351, 32
    %v405 = vpop.permute.xlu0 %404
    %v407 = vmul.f32 %v401, %v405
    %409 = vrot.lane.b32.xlu0 %v402, 64
    %v410 = vpop.permute.xlu0 %409
    %v412 = vmul.f32 %v401, %v410
    %414 = vrot.lane.b32.xlu0 %v412, 32
    %v415 = vpop.permute.xlu0 %414
    %v417 = vadd.f32 %v407, %v415
    %v418 = vtanh.pop %v417
    %420 = vrot.lane.b32.xlu0 %v418, 64
    %v421 = vpop.permute.xlu0 %420
    %v423 = vmul.f32 %v401, %v421
    %s424 = scalar_lea.vmem [#allocation5], 24
    %v425 = vld [vmem:[%s424] sm:$0xff]
    %v426 = vsub.f32 %v417, %v405
    %428 = vrot.lane.b32.xlu0 %v426, 96
    %v429 = vpop.permute.xlu0 %428
    %v431 = vmul.f32 %v425, %v429
    %v432 = vadd.f32 %v351, %v431
    %434 = vrot.lane.b32.xlu0 %v362, 96
    %v435 = vpop.permute.xlu0 %434
    %v437 = vsub.f32 %v423, %v435
    %439 = vrot.lane.b32.xlu0 %v437, 32
    %v440 = vpop.permute.xlu0 %439
    %v442 = vmul.f32 %v425, %v440
    %v443 = vadd.f32 %v362, %v442
    %s444 = scalar_lea.vmem [#allocation3], 32
    %v445 = vld [vmem:[%s444] sm:$0xff]
    %v446 = vpack.c.bf16 %v443, %v443
    %v448 = vsel %vm123, %v446, 0
    %450 = vmatpush.bf16.msra.mxu0 0
    %451 = vmatpush.bf16.msra.mxu0 0
    %452 = vmatpush.bf16.msra.mxu0 0
    %453 = vmatpush.bf16.msra.mxu0 0
    %454 = vmatpush.bf16.msra.mxu0 0
    %455 = vmatpush.bf16.msra.mxu0 0
    %456 = vmatpush.bf16.msra.mxu0 %v120
    %457 = vmatpush.bf16.msra.mxu0 %v119
    %458 = vmatmul.bf16.gmra.mxu0 %v448
    %v459 = vpop.f32.mrf.mxu0
    %v460 = vadd.f32 0.0, %v459
    %v461 = vpop.f32.mrf.mxu0
    %462 = vdwg.mxu0
    %v463 = vadd.f32 %v445, %v460
    %v464 = vxor.u32 %v463, 2147483648
    %v465 = vmul.f32 %v464, 1.442695
    %v466 = vpow.pop %v465
    %v467 = vadd.f32 %v466, 1.0
    %v468 = vrcp.pop %v467
    %v469 = vmul.f32 %v467, %v468
    %v470 = vsub.f32 1.0, %v469
    %v471 = vmul.f32 %v468, %v470
    %v472 = vadd.f32 %v468, %v471
    %vm473 = vweird.f32 %v467
    %vm474 = vweird.f32 %v468
    %vm475 = vmor %vm473, %vm474
    %v476 = vsel %vm475, %v468, %v472
    %v477 = vand.u32 2147483647, %v467
    %vm478 = vcmp.eq.f32.partialorder %v477, 8.507059e+37
    %v479 = vand.u32 %v467, 2147483648
    %v480 = vor.u32 1.1754944e-38, %v479
    %v481 = vsel %vm478, %v480, %v476
    %v482 = vmul.f32 1.0, %v481
    %v483 = vtanh.pop %v463
    %485 = vrot.lane.b32.xlu0 %v432, 32
    %v486 = vpop.permute.xlu0 %485
    %v488 = vmul.f32 %v482, %v486
    %490 = vrot.lane.b32.xlu0 %v483, 64
    %v491 = vpop.permute.xlu0 %490
    %v493 = vmul.f32 %v482, %v491
    %495 = vrot.lane.b32.xlu0 %v493, 32
    %v496 = vpop.permute.xlu0 %495
    %v498 = vadd.f32 %v488, %v496
    %v499 = vtanh.pop %v498
    %501 = vrot.lane.b32.xlu0 %v499, 64
    %v502 = vpop.permute.xlu0 %501
    %v504 = vmul.f32 %v482, %v502
    %s505 = scalar_lea.vmem [#allocation5], 32
    %v506 = vld [vmem:[%s505] sm:$0xff]
    %v507 = vsub.f32 %v498, %v486
    %509 = vrot.lane.b32.xlu0 %v507, 96
    %v510 = vpop.permute.xlu0 %509
    %v512 = vmul.f32 %v506, %v510
    %v513 = vadd.f32 %v432, %v512
    %515 = vrot.lane.b32.xlu0 %v443, 96
    %v516 = vpop.permute.xlu0 %515
    %v518 = vsub.f32 %v504, %v516
    %520 = vrot.lane.b32.xlu0 %v518, 32
    %v521 = vpop.permute.xlu0 %520
    %v523 = vmul.f32 %v506, %v521
    %v524 = vadd.f32 %v443, %v523
    %s525 = scalar_lea.vmem [#allocation3], 40
    %v526 = vld [vmem:[%s525] sm:$0xff]
    %v527 = vpack.c.bf16 %v524, %v524
    %v529 = vsel %vm123, %v527, 0
    %531 = vmatpush.bf16.msra.mxu0 0
    %532 = vmatpush.bf16.msra.mxu0 0
    %533 = vmatpush.bf16.msra.mxu0 0
    %534 = vmatpush.bf16.msra.mxu0 0
    %535 = vmatpush.bf16.msra.mxu0 0
    %536 = vmatpush.bf16.msra.mxu0 0
    %537 = vmatpush.bf16.msra.mxu0 %v120
    %538 = vmatpush.bf16.msra.mxu0 %v119
    %539 = vmatmul.bf16.gmra.mxu0 %v529
    %v540 = vpop.f32.mrf.mxu0
    %v541 = vadd.f32 0.0, %v540
    %v542 = vpop.f32.mrf.mxu0
    %543 = vdwg.mxu0
    %v544 = vadd.f32 %v526, %v541
    %v545 = vxor.u32 %v544, 2147483648
    %v546 = vmul.f32 %v545, 1.442695
    %v547 = vpow.pop %v546
    %v548 = vadd.f32 %v547, 1.0
    %v549 = vrcp.pop %v548
    %v550 = vmul.f32 %v548, %v549
    %v551 = vsub.f32 1.0, %v550
    %v552 = vmul.f32 %v549, %v551
    %v553 = vadd.f32 %v549, %v552
    %vm554 = vweird.f32 %v548
    %vm555 = vweird.f32 %v549
    %vm556 = vmor %vm554, %vm555
    %v557 = vsel %vm556, %v549, %v553
    %v558 = vand.u32 2147483647, %v548
    %vm559 = vcmp.eq.f32.partialorder %v558, 8.507059e+37
    %v560 = vand.u32 %v548, 2147483648
    %v561 = vor.u32 1.1754944e-38, %v560
    %v562 = vsel %vm559, %v561, %v557
    %v563 = vmul.f32 1.0, %v562
    %v564 = vtanh.pop %v544
    %566 = vrot.lane.b32.xlu0 %v513, 32
    %v567 = vpop.permute.xlu0 %566
    %v569 = vmul.f32 %v563, %v567
    %571 = vrot.lane.b32.xlu0 %v564, 64
    %v572 = vpop.permute.xlu0 %571
    %v574 = vmul.f32 %v563, %v572
    %576 = vrot.lane.b32.xlu0 %v574, 32
    %v577 = vpop.permute.xlu0 %576
    %v579 = vadd.f32 %v569, %v577
    %v580 = vtanh.pop %v579
    %582 = vrot.lane.b32.xlu0 %v580, 64
    %v583 = vpop.permute.xlu0 %582
    %v585 = vmul.f32 %v563, %v583
    %s586 = scalar_lea.vmem [#allocation5], 40
    %v587 = vld [vmem:[%s586] sm:$0xff]
    %v588 = vsub.f32 %v579, %v567
    %590 = vrot.lane.b32.xlu0 %v588, 96
    %v591 = vpop.permute.xlu0 %590
    %v593 = vmul.f32 %v587, %v591
    %v594 = vadd.f32 %v513, %v593
    %596 = vrot.lane.b32.xlu0 %v524, 96
    %v597 = vpop.permute.xlu0 %596
    %v599 = vsub.f32 %v585, %v597
    %601 = vrot.lane.b32.xlu0 %v599, 32
    %v602 = vpop.permute.xlu0 %601
    %v604 = vmul.f32 %v587, %v602
    %v605 = vadd.f32 %v524, %v604
    %s606 = scalar_lea.vmem [#allocation3], 48
    %v607 = vld [vmem:[%s606] sm:$0xff]
    %v608 = vpack.c.bf16 %v605, %v605
    %v610 = vsel %vm123, %v608, 0
    %612 = vmatpush.bf16.msra.mxu0 0
    %613 = vmatpush.bf16.msra.mxu0 0
    %614 = vmatpush.bf16.msra.mxu0 0
    %615 = vmatpush.bf16.msra.mxu0 0
    %616 = vmatpush.bf16.msra.mxu0 0
    %617 = vmatpush.bf16.msra.mxu0 0
    %618 = vmatpush.bf16.msra.mxu0 %v120
    %619 = vmatpush.bf16.msra.mxu0 %v119
    %620 = vmatmul.bf16.gmra.mxu0 %v610
    %v621 = vpop.f32.mrf.mxu0
    %v622 = vadd.f32 0.0, %v621
    %v623 = vpop.f32.mrf.mxu0
    %624 = vdwg.mxu0
    %v625 = vadd.f32 %v607, %v622
    %v626 = vxor.u32 %v625, 2147483648
    %v627 = vmul.f32 %v626, 1.442695
    %v628 = vpow.pop %v627
    %v629 = vadd.f32 %v628, 1.0
    %v630 = vrcp.pop %v629
    %v631 = vmul.f32 %v629, %v630
    %v632 = vsub.f32 1.0, %v631
    %v633 = vmul.f32 %v630, %v632
    %v634 = vadd.f32 %v630, %v633
    %vm635 = vweird.f32 %v629
    %vm636 = vweird.f32 %v630
    %vm637 = vmor %vm635, %vm636
    %v638 = vsel %vm637, %v630, %v634
    %v639 = vand.u32 2147483647, %v629
    %vm640 = vcmp.eq.f32.partialorder %v639, 8.507059e+37
    %v641 = vand.u32 %v629, 2147483648
    %v642 = vor.u32 1.1754944e-38, %v641
    %v643 = vsel %vm640, %v642, %v638
    %v644 = vmul.f32 1.0, %v643
    %v645 = vtanh.pop %v625
    %647 = vrot.lane.b32.xlu0 %v594, 32
    %v648 = vpop.permute.xlu0 %647
    %v650 = vmul.f32 %v644, %v648
    %652 = vrot.lane.b32.xlu0 %v645, 64
    %v653 = vpop.permute.xlu0 %652
    %v655 = vmul.f32 %v644, %v653
    %657 = vrot.lane.b32.xlu0 %v655, 32
    %v658 = vpop.permute.xlu0 %657
    %v660 = vadd.f32 %v650, %v658
    %v661 = vtanh.pop %v660
    %663 = vrot.lane.b32.xlu0 %v661, 64
    %v664 = vpop.permute.xlu0 %663
    %v666 = vmul.f32 %v644, %v664
    %s667 = scalar_lea.vmem [#allocation5], 48
    %v668 = vld [vmem:[%s667] sm:$0xff]
    %v669 = vsub.f32 %v660, %v648
    %671 = vrot.lane.b32.xlu0 %v669, 96
    %v672 = vpop.permute.xlu0 %671
    %v674 = vmul.f32 %v668, %v672
    %v675 = vadd.f32 %v594, %v674
    %677 = vrot.lane.b32.xlu0 %v605, 96
    %v678 = vpop.permute.xlu0 %677
    %v680 = vsub.f32 %v666, %v678
    %682 = vrot.lane.b32.xlu0 %v680, 32
    %v683 = vpop.permute.xlu0 %682
    %v685 = vmul.f32 %v668, %v683
    %v686 = vadd.f32 %v605, %v685
    %s687 = scalar_lea.vmem [#allocation3], 56
    %v688 = vld [vmem:[%s687] sm:$0xff]
    %v689 = vpack.c.bf16 %v686, %v686
    %v691 = vsel %vm123, %v689, 0
    %693 = vmatpush.bf16.msra.mxu0 0
    %694 = vmatpush.bf16.msra.mxu0 0
    %695 = vmatpush.bf16.msra.mxu0 0
    %696 = vmatpush.bf16.msra.mxu0 0
    %697 = vmatpush.bf16.msra.mxu0 0
    %698 = vmatpush.bf16.msra.mxu0 0
    %699 = vmatpush.bf16.msra.mxu0 %v120
    %700 = vmatpush.bf16.msra.mxu0 %v119
    %701 = vmatmul.bf16.gmra.mxu0 %v691
    %v702 = vpop.f32.mrf.mxu0
    %v703 = vadd.f32 0.0, %v702
    %v704 = vpop.f32.mrf.mxu0
    %705 = vdwg.mxu0
    %v706 = vadd.f32 %v688, %v703
    %v707 = vxor.u32 %v706, 2147483648
    %v708 = vmul.f32 %v707, 1.442695
    %v709 = vpow.pop %v708
    %v710 = vadd.f32 %v709, 1.0
    %v711 = vrcp.pop %v710
    %v712 = vmul.f32 %v710, %v711
    %v713 = vsub.f32 1.0, %v712
    %v714 = vmul.f32 %v711, %v713
    %v715 = vadd.f32 %v711, %v714
    %vm716 = vweird.f32 %v710
    %vm717 = vweird.f32 %v711
    %vm718 = vmor %vm716, %vm717
    %v719 = vsel %vm718, %v711, %v715
    %v720 = vand.u32 2147483647, %v710
    %vm721 = vcmp.eq.f32.partialorder %v720, 8.507059e+37
    %v722 = vand.u32 %v710, 2147483648
    %v723 = vor.u32 1.1754944e-38, %v722
    %v724 = vsel %vm721, %v723, %v719
    %v725 = vmul.f32 1.0, %v724
    %v726 = vtanh.pop %v706
    %728 = vrot.lane.b32.xlu0 %v675, 32
    %v729 = vpop.permute.xlu0 %728
    %v731 = vmul.f32 %v725, %v729
    %733 = vrot.lane.b32.xlu0 %v726, 64
    %v734 = vpop.permute.xlu0 %733
    %v736 = vmul.f32 %v725, %v734
    %738 = vrot.lane.b32.xlu0 %v736, 32
    %v739 = vpop.permute.xlu0 %738
    %v741 = vadd.f32 %v731, %v739
    %v742 = vtanh.pop %v741
    %744 = vrot.lane.b32.xlu0 %v742, 64
    %v745 = vpop.permute.xlu0 %744
    %v747 = vmul.f32 %v725, %v745
    %s748 = scalar_lea.vmem [#allocation5], 56
    %v749 = vld [vmem:[%s748] sm:$0xff]
    %751 = vrot.lane.b32.xlu0 %v686, 96
    %v752 = vpop.permute.xlu0 %751
    %v754 = vsub.f32 %v747, %v752
    %756 = vrot.lane.b32.xlu0 %v754, 32
    %v757 = vpop.permute.xlu0 %756
    %v759 = vmul.f32 %v749, %v757
    %v760 = vadd.f32 %v686, %v759
    %v761 = vld [vmem:[%s5] sm:$0x1]
    %v763 = vperm.slane %v761, 0
    %v765 = vmul.f32 %v760, %v763
    %v766 = vsel %vm123, %v765, 0.0
    %767 = vadd.xlane.f32.xlu0 %v766
    %v768 = vpop.xlane.xlu0 %767
    %v769 = vld [vmem:[#allocation2] sm:$0x1]
    %v771 = vperm.slane %v769, 0
    %v773 = vadd.f32 %v768, %v771
    %v774 = vmax.f32 %v773, 0.0
    %vm775 = vcmask 7168
    %776 = vst.msk [vmem:[%s7] sm:$0xff] %vm775, %v774
    // Predicated region
    $region50: #{tpu_custom_call.1} parent=1 // pred_check
      _
    $region51: #{tpu_custom_call.1} parent=1 // pred_check_branch
      %778 = sbr.rel (0) target = $region53
    $region52: #{tpu_custom_call.1} parent=1 // pred_region
      _
    $region53: #{tpu_custom_call.1} parent=1 // pred_fallthru
      _
    // Predicated region
    $region54: #{tpu_custom_call.1} parent=1 // pred_check
      _
    $region55: #{tpu_custom_call.1} parent=1 // pred_check_branch
      %780 = sbr.rel (0) target = $region57
    $region56: #{tpu_custom_call.1} parent=1 // pred_region
      _
    $region57: #{tpu_custom_call.1} parent=1 // pred_fallthru
      _
    %781 = vsyncpa [#allocation4], 1
    %782 = vsyncpa [#allocation6], 1
    %783 = vsyncpa [#allocation9], 1

</llo_original>
